<compile_context>
chip_gen: v6e
topology: v6e:2x2x1
jax: 0.10.0
libtpu: 0.0.40
codegen_flags: <defaults>
</compile_context>

<pallas_src>
import functools

import jax
import jax.numpy as jnp
from jax import lax
from jax.experimental import pallas as pl
from jax.experimental.pallas import tpu as pltpu

LN_EPS = 1e-5  # torch.nn.LayerNorm default
_MIB = 1024 * 1024


def _round_up(a, b):
    return (a + b - 1) // b * b


def _cdiv(a, b):
    return (a + b - 1) // b


def _sublane(dtype):
    # dtype sublane tile: 8 for f32, 16 for bf16, 32 for int8.
    return max(8, 32 // jnp.dtype(dtype).itemsize)


def _vmem_capacity_bytes():
    try:
        return int(pltpu.get_tpu_info().vmem_capacity_bytes)
    except Exception:
        return 64 * _MIB  # conservative fallback (v7x per-TC VMEM)


# ---------------------------------------------------------------------------
# kernels
# ---------------------------------------------------------------------------
def _layer_norm_f32(y, g_ref, bt_ref, d_out_valid):
    """LayerNorm over the last axis of f32 `y`; padded columns (>= d_out_valid)
    are excluded from the statistics via a single (1, d_out_pad) row mask."""
    d_out_pad = y.shape[-1]
    if d_out_pad == d_out_valid:
        mean = jnp.mean(y, axis=-1, keepdims=True)
        centered = y - mean
    else:
        col = lax.broadcasted_iota(jnp.int32, (1, d_out_pad), 1)
        mask = (col < d_out_valid).astype(jnp.float32)        # (1, d_out_pad)
        mean = jnp.sum(y * mask, axis=-1, keepdims=True) / d_out_valid
        centered = (y - mean) * mask
    var = jnp.sum(centered * centered, axis=-1, keepdims=True) / d_out_valid
    inv = lax.rsqrt(var + LN_EPS)
    return (centered * inv * g_ref[...].astype(jnp.float32)
            + bt_ref[...].astype(jnp.float32))


def _kernel_resident_w(x_ref, w_ref, b_ref, g_ref, bt_ref, o_ref, *, d_out_valid):
    """Single K step: the whole [d_in, d_out_pad] weight stays resident in VMEM
    (constant block index), no accumulator read-modify-write."""
    y = jnp.dot(x_ref[...], w_ref[...], preferred_element_type=jnp.float32)
    y = y + b_ref[...].astype(jnp.float32)
    o_ref[...] = _layer_norm_f32(y, g_ref, bt_ref, d_out_valid).astype(o_ref.dtype)


def _kernel_k_tiled(x_ref, w_ref, b_ref, g_ref, bt_ref, o_ref, acc_ref, *, d_out_valid):
    """K-tiled path for weights too large to keep resident: f32 accumulator with
    pl.when init / LayerNorm epilogue."""
    k = pl.program_id(1)

    @pl.when(k == 0)
    def _():
        acc_ref[...] = jnp.zeros_like(acc_ref)

    acc_ref[...] += jnp.dot(x_ref[...], w_ref[...],
                            preferred_element_type=jnp.float32)

    @pl.when(k == pl.num_programs(1) - 1)
    def _():
        y = acc_ref[...] + b_ref[...].astype(jnp.float32)
        o_ref[...] = _layer_norm_f32(y, g_ref, bt_ref, d_out_valid).astype(o_ref.dtype)


# ---------------------------------------------------------------------------
# wrapper
# ---------------------------------------------------------------------------
def prepare_token_embedding_params(weight, bias, gamma, beta):
    """One-time (module-init) parameter prep -- do NOT call per forward pass.
      * W transposed once to [d_in, d_out] so the kernel uses the canonical
        (((1,),(0,))) contraction (no per-tile weight relayout/transpose).
      * d_out padded once to a multiple of 128 for lane-dense output stores.
    """
    weight = jnp.asarray(weight)
    d_out, d_in = weight.shape
    d_out_pad = _round_up(d_out, 128)
    w_t = weight.T                                  # [d_in, d_out]
    if d_out_pad != d_out:
        w_t = jnp.pad(w_t, ((0, 0), (0, d_out_pad - d_out)))

    def _vec(v):
        v = jnp.asarray(v)
        if d_out_pad != d_out:
            v = jnp.pad(v, (0, d_out_pad - d_out))
        return v.reshape(1, d_out_pad)

    return dict(w_t=w_t, bias=_vec(bias), gamma=_vec(gamma), beta=_vec(beta),
                d_in=d_in, d_out=d_out)


def token_embedding_apply(x, params, *, tm=None, tk=None, force_k_split=False):
    """Fused Linear(+bias) + LayerNorm forward.

    x: [B, S, d_in] (kept in its own dtype; f32 accumulation inside).
    Returns [B, S, d_out] in x.dtype.
    """
    B, S, d_in = x.shape
    assert d_in == params["d_in"], (d_in, params["d_in"])
    d_out = params["d_out"]
    w_t = params["w_t"]
    b2, g2, bt2 = params["bias"], params["gamma"], params["beta"]
    d_out_pad = w_t.shape[1]

    M = B * S
    x2 = x.reshape(M, d_in)          # no M/K padding of x -> no extra HBM pass

    x_it = x2.dtype.itemsize
    w_it = w_t.dtype.itemsize
    o_it = x_it
    small = 3 * 2 * d_out_pad * 4    # bias/gamma/beta tiles (double-buffered)

    cap = _vmem_capacity_bytes()
    budget = int(0.80 * cap)         # leave Mosaic internal-scratch headroom
    big_vmem = cap >= 96 * _MIB      # v5e / v6e (128 MiB) vs v7x (64 MiB)

    if tm is None:                   # larger tiles where VMEM is plentiful
        tm = 512 if (big_vmem and d_out_pad <= 2048) else 256
    if tk is None:
        tk = 1024 if big_vmem else 512

    # ---- row (M) tiling: balanced tiles, ragged edge handled by Pallas store
    # masking.  Keep >= 2 row tiles so the "parallel" axis can be sharded
    # across both v7x TensorCores.  tm rounds to the dtype sublane tile.
    sub = _sublane(x2.dtype)
    num_i = max(_cdiv(M, tm), 2 if M >= 2 * sub else 1)
    tm_eff = _round_up(_cdiv(M, num_i), sub)
    grid_i = _cdiv(M, tm_eff)

    def _resident_footprint(tm_):
        return (2 * tm_ * d_in * x_it + 2 * d_in * d_out_pad * w_it
                + 2 * tm_ * d_out_pad * o_it + small)

    weight_resident = (not force_k_split) and _resident_footprint(tm_eff) <= budget

    if weight_resident:
        # ---- single K step: weight DMA'd once, stays resident, no accumulator.
        x_in, w_in = x2, w_t
        est = _resident_footprint(tm_eff)
        grid = (grid_i,)
        kernel = functools.partial(_kernel_resident_w, d_out_valid=d_out)
        in_specs = [
            pl.BlockSpec((tm_eff, d_in), lambda i: (i, 0)),
            pl.BlockSpec((d_in, d_out_pad), lambda i: (0, 0)),    # resident
            pl.BlockSpec((1, d_out_pad), lambda i: (0, 0)),
            pl.BlockSpec((1, d_out_pad), lambda i: (0, 0)),
            pl.BlockSpec((1, d_out_pad), lambda i: (0, 0)),
        ]
        out_spec = pl.BlockSpec((tm_eff, d_out_pad), lambda i: (i, 0))
        scratch = []
        dim_sem = ("parallel",)
        num_k = 1
    else:
        # ---- K tiled: pick tk that divides d_in so x needs no K padding.
        def _pick_tk(limit):
            c = max(128, (min(limit, d_in) // 128) * 128)
            while c >= 128:
                if d_in % c == 0:
                    return c
                c -= 128
            return None

        tk_eff = _pick_tk(tk)
        need_k_pad = tk_eff is None
        if need_k_pad:
            # d_in not a multiple of 128: rare fallback, pad K once here.
            tk_eff = min(_round_up(tk, 128), _round_up(d_in, 128))
        K_pad = _round_up(d_in, tk_eff)

        def _tiled_footprint(tm_, tk_):
            return (2 * tm_ * tk_ * x_it + 2 * tk_ * d_out_pad * w_it
                    + 2 * tm_ * d_out_pad * o_it + tm_ * d_out_pad * 4 + small)

        # auto-downscale tk, then tm, until the footprint fits the VMEM budget
        while _tiled_footprint(tm_eff, tk_eff) > budget:
            if tk_eff > 128:
                if need_k_pad:
                    tk_eff = max(128, _round_up(tk_eff // 2, 128))
                else:
                    tk_eff = _pick_tk(max(128, tk_eff // 2))
                K_pad = _round_up(d_in, tk_eff)
            elif tm_eff > sub:
                tm_eff = max(sub, _round_up(tm_eff // 2, sub))
                grid_i = _cdiv(M, tm_eff)
            else:
                # TODO(synk): add an N (d_out) grid axis for pathologically wide
                # d_out instead of relying on one huge output tile.
                break

        if K_pad != d_in:
            x_in = jnp.pad(x2, ((0, 0), (0, K_pad - d_in)))
            w_in = jnp.pad(w_t, ((0, K_pad - d_in), (0, 0)))
        else:
            x_in, w_in = x2, w_t

        est = _tiled_footprint(tm_eff, tk_eff)
        num_k = K_pad // tk_eff
        grid = (grid_i, num_k)
        kernel = functools.partial(_kernel_k_tiled, d_out_valid=d_out)
        in_specs = [
            pl.BlockSpec((tm_eff, tk_eff), lambda i, k: (i, k)),
            pl.BlockSpec((tk_eff, d_out_pad), lambda i, k: (k, 0)),
            pl.BlockSpec((1, d_out_pad), lambda i, k: (0, 0)),
            pl.BlockSpec((1, d_out_pad), lambda i, k: (0, 0)),
            pl.BlockSpec((1, d_out_pad), lambda i, k: (0, 0)),
        ]
        out_spec = pl.BlockSpec((tm_eff, d_out_pad), lambda i, k: (i, 0))
        scratch = [pltpu.VMEM((tm_eff, d_out_pad), jnp.float32)]
        dim_sem = ("parallel", "arbitrary")

    # est already includes double buffering; add Mosaic headroom, cap below
    # physical VMEM (important on v7x's 64 MiB).
    vmem_limit = int(min(max(32 * _MIB, est + 8 * _MIB), int(0.85 * cap)))

    cost = pl.CostEstimate(
        flops=int(2 * M * d_in * d_out + 10 * M * d_out),
        transcendentals=int(M),
        bytes_accessed=int(M * d_in * x_it
                           + d_in * d_out_pad * w_it * (1 if num_k == 1 else grid_i)
                           + M * d_out_pad * o_it + 3 * d_out_pad * 4),
    )

    out = pl.pallas_call(
        kernel,
        out_shape=jax.ShapeDtypeStruct((M, d_out_pad), x.dtype),
        grid_spec=pltpu.PrefetchScalarGridSpec(
            num_scalar_prefetch=0,
            grid=grid,
            in_specs=in_specs,
            out_specs=out_spec,
            scratch_shapes=scratch,
        ),
        compiler_params=pltpu.CompilerParams(
            dimension_semantics=dim_sem,
            vmem_limit_bytes=vmem_limit,
        ),
        cost_estimate=cost,
    )(x_in, w_in, b2, g2, bt2)

    if d_out_pad != d_out:
        out = out[:, :d_out]
    return out.reshape(B, S, d_out)


def token_embedding(x, weight, bias, gamma, beta, **kwargs):
    """One-shot convenience wrapper (prep + apply).  For repeated forward calls,
    run prepare_token_embedding_params once and reuse its result."""
    params = prepare_token_embedding_params(weight, bias, gamma, beta)
    return token_embedding_apply(x, params, **kwargs)


# ---------------------------------------------------------------------------
# reference + tests
# ---------------------------------------------------------------------------
def reference(x, weight, bias, gamma, beta):
    y = jnp.einsum("bsd,ed->bse", x, weight,
                   precision=lax.Precision.HIGHEST,
                   preferred_element_type=jnp.float32) + bias
    mean = jnp.mean(y, axis=-1, keepdims=True)
    var = jnp.mean((y - mean) ** 2, axis=-1, keepdims=True)
    return (y - mean) / jnp.sqrt(var + LN_EPS) * gamma + beta


if __name__ == "__main__":
    def make_inputs(key, B, S, d_in, d_out):
        kx, kw, kb = jax.random.split(key, 3)
        x = jax.random.normal(kx, (B, S, d_in), dtype=jnp.float32)
        bound = 1.0 / (d_in ** 0.5)
        w = jax.random.uniform(kw, (d_out, d_in), minval=-bound, maxval=bound,
                               dtype=jnp.float32)
        b = jax.random.uniform(kb, (d_out,), minval=-bound, maxval=bound,
                               dtype=jnp.float32)
        g = jnp.ones((d_out,), jnp.float32)    # LayerNorm weight
        bt = jnp.zeros((d_out,), jnp.float32)  # LayerNorm bias
        return x, w, b, g, bt

    # ---- test 1: module's small shape; resident-weight path, padded d_out,
    #      two row tiles (exercises the "parallel" M axis) --------------------
    x, w, b, g, bt = make_inputs(jax.random.PRNGKey(0), 2, 8, 4, 32)
    params = prepare_token_embedding_params(w, b, g, bt)   # one-time prep
    out = jax.block_until_ready(token_embedding_apply(x, params))
    ref = reference(x, w, b, g, bt)
    assert out.shape == (2, 8, 32)
    assert jnp.allclose(out, ref, atol=2e-3, rtol=2e-3), \
        float(jnp.max(jnp.abs(out - ref)))

    # ---- test 2: forced K-tiled accumulator path (d_in=256, tk=128) --------
    x2, w2, b2, g2, bt2 = make_inputs(jax.random.PRNGKey(1), 2, 8, 256, 32)
    out2 = jax.block_until_ready(
        token_embedding(x2, w2, b2, g2, bt2, tk=128, force_k_split=True))
    ref2 = reference(x2, w2, b2, g2, bt2)
    assert out2.shape == (2, 8, 32)
    assert jnp.allclose(out2, ref2, atol=2e-3, rtol=2e-3), \
        float(jnp.max(jnp.abs(out2 - ref2)))

    # ---- test 3: ragged M (M=24 with 16-row tiles -> masked last tile) -----
    x3, w3, b3, g3, bt3 = make_inputs(jax.random.PRNGKey(2), 2, 12, 4, 32)
    out3 = jax.block_until_ready(token_embedding(x3, w3, b3, g3, bt3, tm=16))
    ref3 = reference(x3, w3, b3, g3, bt3)
    assert out3.shape == (2, 12, 32)
    assert jnp.allclose(out3, ref3, atol=2e-3, rtol=2e-3), \
        float(jnp.max(jnp.abs(out3 - ref3)))

    print("KERNEL_OK")
</pallas_src>

<mosaic_0001>
module attributes {stable_mosaic.version = 11 : i64} {
  func.func @_kernel_resident_w(%arg0: i32, %arg1: memref<8x4xf32, #tpu.memory_space<vmem>>, %arg2: memref<4x128xf32, #tpu.memory_space<vmem>>, %arg3: memref<1x128xf32, #tpu.memory_space<vmem>>, %arg4: memref<1x128xf32, #tpu.memory_space<vmem>>, %arg5: memref<1x128xf32, #tpu.memory_space<vmem>>, %arg6: memref<8x128xf32, #tpu.memory_space<vmem>>) attributes {dimension_semantics = [#tpu.dimension_semantics<parallel>], iteration_bounds = array<i64: 2>, scalar_prefetch = 0 : i64, scratch_operands = 0 : i64, tpu.core_type = #tpu.core_type<tc>, window_params = [{transform_indices = @transform_0, window_bounds = array<i64: 8, 4>}, {pipeline_mode = #tpu.pipeline_mode<synchronous>, transform_indices = @transform_1, window_bounds = array<i64: 4, 128>}, {pipeline_mode = #tpu.pipeline_mode<synchronous>, transform_indices = @transform_2, window_bounds = array<i64: 1, 128>}, {pipeline_mode = #tpu.pipeline_mode<synchronous>, transform_indices = @transform_3, window_bounds = array<i64: 1, 128>}, {pipeline_mode = #tpu.pipeline_mode<synchronous>, transform_indices = @transform_4, window_bounds = array<i64: 1, 128>}, {transform_indices = @transform_5, window_bounds = array<i64: 8, 128>}]} {
    %c0 = arith.constant 0 : index
    %c0_0 = arith.constant 0 : index
    %0 = vector.load %arg1[%c0, %c0_0] : memref<8x4xf32, #tpu.memory_space<vmem>>, vector<8x4xf32>
    %c0_1 = arith.constant 0 : index
    %c0_2 = arith.constant 0 : index
    %1 = vector.load %arg2[%c0_1, %c0_2] : memref<4x128xf32, #tpu.memory_space<vmem>>, vector<4x128xf32>
    %cst = arith.constant dense<0.000000e+00> : vector<8x128xf32>
    %2 = tpu.matmul %0, %1, %cst {dimension_numbers = #tpu.dot_dimension_numbers<[1], [0], [0], [1], [0, 0, 1, 1], [], []>} : vector<8x4xf32>, vector<4x128xf32>, vector<8x128xf32> -> vector<8x128xf32>
    %c0_3 = arith.constant 0 : index
    %c0_4 = arith.constant 0 : index
    %3 = vector.load %arg3[%c0_3, %c0_4] : memref<1x128xf32, #tpu.memory_space<vmem>>, vector<1x128xf32>
    %4 = vector.broadcast %3 : vector<1x128xf32> to vector<8x128xf32>
    %5 = arith.addf %2, %4 : vector<8x128xf32>
    %6 = tpu.iota {dimensions = array<i32: 1>} : vector<1x128xi32>
    %c32_i32 = arith.constant 32 : i32
    %7 = vector.broadcast %c32_i32 : i32 to vector<1x128xi32>
    %8 = arith.cmpi slt, %6, %7 : vector<1x128xi32>
    %9 = arith.extui %8 : vector<1x128xi1> to vector<1x128xi32>
    %10 = arith.sitofp %9 : vector<1x128xi32> to vector<1x128xf32>
    %11 = vector.broadcast %10 : vector<1x128xf32> to vector<8x128xf32>
    %12 = arith.mulf %5, %11 : vector<8x128xf32>
    %cst_5 = arith.constant dense<0.000000e+00> : vector<8xf32>
    %13 = vector.multi_reduction <add>, %12, %cst_5 [1] : vector<8x128xf32> to vector<8xf32>
    %14 = vector.shape_cast %13 : vector<8xf32> to vector<8x1xf32>
    %cst_6 = arith.constant 3.200000e+01 : f32
    %15 = vector.broadcast %cst_6 : f32 to vector<8x1xf32>
    %16 = arith.divf %14, %15 : vector<8x1xf32>
    %17 = vector.broadcast %16 : vector<8x1xf32> to vector<8x128xf32>
    %18 = arith.subf %5, %17 : vector<8x128xf32>
    %19 = vector.broadcast %10 : vector<1x128xf32> to vector<8x128xf32>
    %20 = arith.mulf %18, %19 : vector<8x128xf32>
    %21 = arith.mulf %20, %20 : vector<8x128xf32>
    %cst_7 = arith.constant dense<0.000000e+00> : vector<8xf32>
    %22 = vector.multi_reduction <add>, %21, %cst_7 [1] : vector<8x128xf32> to vector<8xf32>
    %23 = vector.shape_cast %22 : vector<8xf32> to vector<8x1xf32>
    %cst_8 = arith.constant 3.200000e+01 : f32
    %24 = vector.broadcast %cst_8 : f32 to vector<8x1xf32>
    %25 = arith.divf %23, %24 : vector<8x1xf32>
    %cst_9 = arith.constant 9.99999974E-6 : f32
    %26 = vector.broadcast %cst_9 : f32 to vector<8x1xf32>
    %27 = arith.addf %25, %26 : vector<8x1xf32>
    %28 = math.rsqrt %27 : vector<8x1xf32>
    %29 = vector.broadcast %28 : vector<8x1xf32> to vector<8x128xf32>
    %30 = arith.mulf %20, %29 : vector<8x128xf32>
    %c0_10 = arith.constant 0 : index
    %c0_11 = arith.constant 0 : index
    %31 = vector.load %arg4[%c0_10, %c0_11] : memref<1x128xf32, #tpu.memory_space<vmem>>, vector<1x128xf32>
    %32 = vector.broadcast %31 : vector<1x128xf32> to vector<8x128xf32>
    %33 = arith.mulf %30, %32 : vector<8x128xf32>
    %c0_12 = arith.constant 0 : index
    %c0_13 = arith.constant 0 : index
    %34 = vector.load %arg5[%c0_12, %c0_13] : memref<1x128xf32, #tpu.memory_space<vmem>>, vector<1x128xf32>
    %35 = vector.broadcast %34 : vector<1x128xf32> to vector<8x128xf32>
    %36 = arith.addf %33, %35 : vector<8x128xf32>
    %c0_14 = arith.constant 0 : index
    %c0_15 = arith.constant 0 : index
    %37 = vector.load %arg6[%c0_14, %c0_15] : memref<8x128xf32, #tpu.memory_space<vmem>>, vector<8x128xf32>
    tpu.vector_store %arg6[%c0_14, %c0_15], %36 {strides = array<i32>} : memref<8x128xf32, #tpu.memory_space<vmem>>, vector<8x128xf32>,
    return
  }
  func.func @transform_0(%arg0: i32) -> (i32, i32) {
    %c0_i32 = arith.constant 0 : i32
    %c0_i32_0 = arith.constant 0 : i32
    return %arg0, %c0_i32 : i32, i32
  }
  func.func @transform_1(%arg0: i32) -> (i32, i32) {
    %c0_i32 = arith.constant 0 : i32
    %c0_i32_0 = arith.constant 0 : i32
    %c0_i32_1 = arith.constant 0 : i32
    return %c0_i32, %c0_i32_0 : i32, i32
  }
  func.func @transform_2(%arg0: i32) -> (i32, i32) {
    %c0_i32 = arith.constant 0 : i32
    %c0_i32_0 = arith.constant 0 : i32
    %c0_i32_1 = arith.constant 0 : i32
    return %c0_i32, %c0_i32_0 : i32, i32
  }
  func.func @transform_3(%arg0: i32) -> (i32, i32) {
    %c0_i32 = arith.constant 0 : i32
    %c0_i32_0 = arith.constant 0 : i32
    %c0_i32_1 = arith.constant 0 : i32
    return %c0_i32, %c0_i32_0 : i32, i32
  }
  func.func @transform_4(%arg0: i32) -> (i32, i32) {
    %c0_i32 = arith.constant 0 : i32
    %c0_i32_0 = arith.constant 0 : i32
    %c0_i32_1 = arith.constant 0 : i32
    return %c0_i32, %c0_i32_0 : i32, i32
  }
  func.func @transform_5(%arg0: i32) -> (i32, i32) {
    %c0_i32 = arith.constant 0 : i32
    %c0_i32_0 = arith.constant 0 : i32
    return %arg0, %c0_i32 : i32, i32
  }
}

</mosaic_0001>

<llo_original>
// kernel: tpu_custom_call.1
$region0: #{tpu_custom_call.1}
  #allocation0 [shape = 'u32[]', space=smem, size = 0x4, offset = 0x4, fixed_abs, tag = 'smem constant byte address 0x4 - core index']
  #allocation1 [shape = 'u32[144,128]{1,0:T(1,128)}', space=vmem, size = 0x12000, scoped, tag = 'internal scratch']
  %s0 = inlined_call_operand.vmem [shape: f32[16,4], index: 0, kind: input, shape index: {}]
  %s1 = inlined_call_operand.vmem [shape: f32[4,128], index: 1, kind: input, shape index: {}]
  %s2 = inlined_call_operand.vmem [shape: f32[1,128], index: 2, kind: input, shape index: {}]
  %s3 = inlined_call_operand.vmem [shape: f32[1,128], index: 3, kind: input, shape index: {}]
  %s4 = inlined_call_operand.vmem [shape: f32[1,128], index: 4, kind: input, shape index: {}]
  %s5 = inlined_call_operand.hbm [shape: f32[16,128], index: 5, kind: output, shape index: {}]
  %s6 = sld [smem:[#allocation0]]
  $region53: #{tpu_custom_call.1} parent=0
    _
  %s8 = ssub.s32 1, %s6
  %s9 = scalar_select 0, %s8, %s6
  $region1: #{tpu_custom_call.1} parent=0
    #allocation2 [shape = 'u8[8192]{0}', space=vmem, size = 0x2000, scoped, tag = 'output window, operand 0']
    #allocation3 [shape = 's32[2]{0}', space=sflag, size = 0x8, scoped, tag = 'scoped memory for tpu_custom_call.1']
    %10 = vsyncpa [#allocation3], 0
    %s11 = scalar_lea.sflag [#allocation3], 1
    %12 = vsyncpa %s11, 0
    loop: start=0, step=1, limit=4
    $region2: #{tpu_custom_call.1} parent=1 // loop_pre_header
      _
    $region3: #{tpu_custom_call.1} parent=1 // loop_header
      %s14 = sphi 0, %s18
      %p15 = scmp.ge.s32.totalorder %s14, 4
      %s24 = sphi 0, %s26
      %s27 = sphi 0, %s24
      %s28 = sphi 0, %s27
      %s44 = sphi 0, %s28
      %s48 = sphi 0, %s48
      %s50 = sphi 0, %s48
      %s51 = sphi 0, %s50
      %s65 = sphi 0, %s51
      %s69 = sphi 0, %s69
      %s71 = sphi 0, %s69
      %s72 = sphi 0, %s71
      %s86 = sphi 0, %s72
      %s90 = sphi 0, %s90
      %s92 = sphi 0, %s90
      %s93 = sphi 0, %s92
      %s107 = sphi 0, %s93
      %s111 = sphi 0, %s111
      %s113 = sphi 0, %s111
      %s114 = sphi 0, %s113
      %s128 = sphi 0, %s114
      %s134 = sphi 0, %s136
      %s137 = sphi 0, %s134
      %s138 = sphi 0, %s137
      %s154 = sphi 0, %s138
    $region4: #{tpu_custom_call.1} parent=1 // loop_header_branch
      %17 = sbr.rel (%p15) target = $region8
    $region5: #{tpu_custom_call.1} parent=1 // loop_body
      %s19 = ssub.s32 %s14, 1
      %s20 = ssub.s32 %s14, 2
      %s21 = sadd.s32 %s14, 1
      %s22 = ssub.s32 %s14, %s21
      %p23 = scmp.eq.s32.totalorder %s22, 0
      %s25 = sadd.s32 %s24, 1
      %s26 = scalar_select %p23, %s24, %s25
      %p29 = pneg %p23
      %p30 = scmp.eq.s32.totalorder %s14, 1
      %p31 = por %p29, %p30
      %p32 = scmp.ne.s32.totalorder %s24, %s27
      %p33 = scmp.eq.s32.totalorder %s14, 0
      %p34 = por %p32, %p33
      %p35 = scmp.ne.s32.totalorder %s24, %s27
      %p36 = scmp.eq.s32.totalorder %s19, 1
      %p37 = por %p35, %p36
      %p38 = scmp.ne.s32.totalorder %s27, %s28
      %p39 = scmp.eq.s32.totalorder %s19, 0
      %p40 = por %p38, %p39
      %p41 = scmp.ne.s32.totalorder %s27, %s28
      %p42 = scmp.eq.s32.totalorder %s20, 1
      %p43 = por %p41, %p42
      %p45 = scmp.ne.s32.totalorder %s28, %s44
      %p46 = scmp.eq.s32.totalorder %s20, 0
      %p47 = por %p45, %p46
      %s49 = sadd.s32 %s48, 1
      %p52 = scmp.eq.s32.totalorder %s14, 1
      %p53 = scmp.ne.s32.totalorder %s48, %s50
      %p54 = scmp.eq.s32.totalorder %s14, 0
      %p55 = por %p53, %p54
      %p56 = scmp.ne.s32.totalorder %s48, %s50
      %p57 = scmp.eq.s32.totalorder %s19, 1
      %p58 = por %p56, %p57
      %p59 = scmp.ne.s32.totalorder %s50, %s51
      %p60 = scmp.eq.s32.totalorder %s19, 0
      %p61 = por %p59, %p60
      %p62 = scmp.ne.s32.totalorder %s50, %s51
      %p63 = scmp.eq.s32.totalorder %s20, 1
      %p64 = por %p62, %p63
      %p66 = scmp.ne.s32.totalorder %s51, %s65
      %p67 = scmp.eq.s32.totalorder %s20, 0
      %p68 = por %p66, %p67
      %s70 = sadd.s32 %s69, 1
      %p73 = scmp.eq.s32.totalorder %s14, 1
      %p74 = scmp.ne.s32.totalorder %s69, %s71
      %p75 = scmp.eq.s32.totalorder %s14, 0
      %p76 = por %p74, %p75
      %p77 = scmp.ne.s32.totalorder %s69, %s71
      %p78 = scmp.eq.s32.totalorder %s19, 1
      %p79 = por %p77, %p78
      %p80 = scmp.ne.s32.totalorder %s71, %s72
      %p81 = scmp.eq.s32.totalorder %s19, 0
      %p82 = por %p80, %p81
      %p83 = scmp.ne.s32.totalorder %s71, %s72
      %p84 = scmp.eq.s32.totalorder %s20, 1
      %p85 = por %p83, %p84
      %p87 = scmp.ne.s32.totalorder %s72, %s86
      %p88 = scmp.eq.s32.totalorder %s20, 0
      %p89 = por %p87, %p88
      %s91 = sadd.s32 %s90, 1
      %p94 = scmp.eq.s32.totalorder %s14, 1
      %p95 = scmp.ne.s32.totalorder %s90, %s92
      %p96 = scmp.eq.s32.totalorder %s14, 0
      %p97 = por %p95, %p96
      %p98 = scmp.ne.s32.totalorder %s90, %s92
      %p99 = scmp.eq.s32.totalorder %s19, 1
      %p100 = por %p98, %p99
      %p101 = scmp.ne.s32.totalorder %s92, %s93
      %p102 = scmp.eq.s32.totalorder %s19, 0
      %p103 = por %p101, %p102
      %p104 = scmp.ne.s32.totalorder %s92, %s93
      %p105 = scmp.eq.s32.totalorder %s20, 1
      %p106 = por %p104, %p105
      %p108 = scmp.ne.s32.totalorder %s93, %s107
      %p109 = scmp.eq.s32.totalorder %s20, 0
      %p110 = por %p108, %p109
      %s112 = sadd.s32 %s111, 1
      %p115 = scmp.eq.s32.totalorder %s14, 1
      %p116 = scmp.ne.s32.totalorder %s111, %s113
      %p117 = scmp.eq.s32.totalorder %s14, 0
      %p118 = por %p116, %p117
      %p119 = scmp.ne.s32.totalorder %s111, %s113
      %p120 = scmp.eq.s32.totalorder %s19, 1
      %p121 = por %p119, %p120
      %p122 = scmp.ne.s32.totalorder %s113, %s114
      %p123 = scmp.eq.s32.totalorder %s19, 0
      %p124 = por %p122, %p123
      %p125 = scmp.ne.s32.totalorder %s113, %s114
      %p126 = scmp.eq.s32.totalorder %s20, 1
      %p127 = por %p125, %p126
      %p129 = scmp.ne.s32.totalorder %s114, %s128
      %p130 = scmp.eq.s32.totalorder %s20, 0
      %p131 = por %p129, %p130
      %s132 = ssub.s32 %s14, %s21
      %p133 = scmp.eq.s32.totalorder %s132, 0
      %s135 = sadd.s32 %s134, 1
      %s136 = scalar_select %p133, %s134, %s135
      %p139 = pneg %p133
      %p140 = scmp.eq.s32.totalorder %s14, 1
      %p141 = por %p139, %p140
      %p142 = scmp.ne.s32.totalorder %s134, %s137
      %p143 = scmp.eq.s32.totalorder %s14, 0
      %p144 = por %p142, %p143
      %p145 = scmp.ne.s32.totalorder %s134, %s137
      %p146 = scmp.eq.s32.totalorder %s19, 1
      %p147 = por %p145, %p146
      %p148 = scmp.ne.s32.totalorder %s137, %s138
      %p149 = scmp.eq.s32.totalorder %s19, 0
      %p150 = por %p148, %p149
      %p151 = scmp.ne.s32.totalorder %s137, %s138
      %p152 = scmp.eq.s32.totalorder %s20, 1
      %p153 = por %p151, %p152
      %p155 = scmp.ne.s32.totalorder %s138, %s154
      %p156 = scmp.eq.s32.totalorder %s20, 0
      %p157 = por %p155, %p156
      %p158 = scmp.le.s32.totalorder 1, %s14
      %p159 = scmp.lt.s32.totalorder %s14, 3
      %p160 = pnand %p158, %p159
      %p161 = pneg %p160
      // Predicated region
      $region9: #{tpu_custom_call.1} parent=5 // pred_check
        _
      $region10: #{tpu_custom_call.1} parent=5 // pred_check_branch
        %163 = sbr.rel (%p160) target = $region12
      $region11: #{tpu_custom_call.1} parent=5 // pred_region
        %s164 = ssub.s32 %s14, 1
        // Predicated region
        $region13: #{tpu_custom_call.1} parent=11 // pred_check
          %p165 = pneg %p61
        $region14: #{tpu_custom_call.1} parent=11 // pred_check_branch
          %167 = sbr.rel (%p165) target = $region16
        $region15: #{tpu_custom_call.1} parent=11 // pred_region
          _
        $region16: #{tpu_custom_call.1} parent=11 // pred_fallthru
          _
        // Predicated region
        $region17: #{tpu_custom_call.1} parent=11 // pred_check
          %p168 = pneg %p82
        $region18: #{tpu_custom_call.1} parent=11 // pred_check_branch
          %170 = sbr.rel (%p168) target = $region20
        $region19: #{tpu_custom_call.1} parent=11 // pred_region
          _
        $region20: #{tpu_custom_call.1} parent=11 // pred_fallthru
          _
        // Predicated region
        $region21: #{tpu_custom_call.1} parent=11 // pred_check
          %p171 = pneg %p103
        $region22: #{tpu_custom_call.1} parent=11 // pred_check_branch
          %173 = sbr.rel (%p171) target = $region24
        $region23: #{tpu_custom_call.1} parent=11 // pred_region
          _
        $region24: #{tpu_custom_call.1} parent=11 // pred_fallthru
          _
        // Predicated region
        $region25: #{tpu_custom_call.1} parent=11 // pred_check
          %p174 = pneg %p124
        $region26: #{tpu_custom_call.1} parent=11 // pred_check_branch
          %176 = sbr.rel (%p174) target = $region28
        $region27: #{tpu_custom_call.1} parent=11 // pred_region
          _
        $region28: #{tpu_custom_call.1} parent=11 // pred_fallthru
          _
      $region12: #{tpu_custom_call.1} parent=5 // pred_fallthru
        _
      %p177 = scmp.lt.s32.totalorder %s14, 2
      // Predicated region
      $region29: #{tpu_custom_call.1} parent=5 // pred_check
        %p178 = pneg %p177
      $region30: #{tpu_custom_call.1} parent=5 // pred_check_branch
        %180 = sbr.rel (%p178) target = $region32
      $region31: #{tpu_custom_call.1} parent=5 // pred_region
        // Predicated region
        $region33: #{tpu_custom_call.1} parent=31 // pred_check
          %p181 = pneg %p34
        $region34: #{tpu_custom_call.1} parent=31 // pred_check_branch
          %183 = sbr.rel (%p181) target = $region36
        $region35: #{tpu_custom_call.1} parent=31 // pred_region
          %p184 = scmp.lt.s32.totalorder %s14, 1
          %s185 = scalar_select %p184, %s14, 1
          %s186 = smul.addr %s185, 8
          %s187 = scalar_lea.vmem %s0, %s186
        $region36: #{tpu_custom_call.1} parent=31 // pred_fallthru
          _
      $region32: #{tpu_custom_call.1} parent=5 // pred_fallthru
        _
      %p188 = scmp.le.s32.totalorder 1, %s14
      %p189 = scmp.lt.s32.totalorder %s14, 3
      %p190 = pnand %p188, %p189
      %p191 = pneg %p190
      // Predicated region
      $region37: #{tpu_custom_call.1} parent=5 // pred_check
        _
      $region38: #{tpu_custom_call.1} parent=5 // pred_check_branch
        %193 = sbr.rel (%p190) target = $region40
      $region39: #{tpu_custom_call.1} parent=5 // pred_region
        %s194 = ssub.s32 %s14, 1
        %p195 = scmp.lt.s32.totalorder %s19, 1
        %s196 = scalar_select %p195, %s19, 1
        %s197 = smul.addr %s196, 8
        %s198 = scalar_lea.vmem %s0, %s197
        %p199 = pneg %p40
        %p200 = pneg %p37
        %p201 = pneg %p61
        %p202 = pneg %p58
        %p203 = pneg %p82
        %p204 = pneg %p79
        %p205 = pneg %p103
        %p206 = pneg %p100
        %p207 = pneg %p124
        %p208 = pneg %p121
        %p209 = pneg %p150
        %p210 = pneg %p147
        %s211 = sand.u32 %s137, 1
        %s212 = scalar_lea.sflag [#allocation3], %s211
        %s213 = sand.u32 %s137, 1
        %s214 = smul.addr %s213, 8
        %s215 = scalar_lea.vmem [#allocation2], %s214
        %p216 = scmp.lt.s32.totalorder %s19, 1
        %s217 = scalar_select %p216, %s19, 1
        %s218 = smul.addr %s217, 8
        %s219 = scalar_lea.vmem %s0, %s218
        %v220 = vld [vmem:[%s219] sm:$0xff]
        %v221 = vld [vmem:[%s1] sm:$0xf]
        %v222 = vld [vmem:[%s2] sm:$0x1]
        %v224 = vlaneseq
        %v225 = vshrl.u32 %v224, 7
        %v226 = vsub.s32 0, %v225
        %v227 = vrot.slane %v222, %v226
        %vm229 = vcmask 31744
        %v231 = vsel %vm229, %v220, 0
        %vm233 = vcmask 1043456
        %v235 = vsel %vm233, %v221, 0
        %237 = vmatprep.subr.mxu0 0.0
        %238 = vmatpush1.msra.mxu0 0.0
        %239 = vmatprep.subr.mxu0 0.0
        %240 = vmatpush1.msra.mxu0 0.0
        %241 = vmatprep.subr.mxu0 0.0
        %242 = vmatpush1.msra.mxu0 0.0
        %243 = vmatprep.subr.mxu0 0.0
        %244 = vmatpush1.msra.mxu0 0.0
        %245 = vmatprep.subr.mxu0 0.0
        %246 = vmatpush1.msra.mxu0 0.0
        %247 = vmatprep.subr.mxu0 0.0
        %248 = vmatpush1.msra.mxu0 0.0
        %249 = vmatprep.subr.mxu0 0.0
        %250 = vmatpush1.msra.mxu0 0.0
        %251 = vmatprep.subr.mxu0 0.0
        %252 = vmatpush1.msra.mxu0 0.0
        %253 = vmatprep.subr.mxu0 0.0
        %254 = vmatpush1.msra.mxu0 0.0
        %255 = vmatprep.subr.mxu0 0.0
        %256 = vmatpush1.msra.mxu0 0.0
        %257 = vmatprep.subr.mxu0 0.0
        %258 = vmatpush1.msra.mxu0 0.0
        %259 = vmatprep.subr.mxu0 0.0
        %260 = vmatpush1.msra.mxu0 0.0
        %261 = vmatprep.subr.mxu0 0.0
        %262 = vmatpush1.msra.mxu0 0.0
        %263 = vmatprep.subr.mxu0 0.0
        %264 = vmatpush1.msra.mxu0 0.0
        %265 = vmatprep.subr.mxu0 0.0
        %266 = vmatpush1.msra.mxu0 0.0
        %267 = vmatprep.subr.mxu0 0.0
        %268 = vmatpush1.msra.mxu0 %v235
        %269 = vmatprep.subr.mxu0 0.0
        %270 = vmatpush2.msra.mxu0 0.0
        %271 = vmatprep.subr.mxu0 0.0
        %272 = vmatpush2.msra.mxu0 0.0
        %273 = vmatprep.subr.mxu0 0.0
        %274 = vmatpush2.msra.mxu0 0.0
        %275 = vmatprep.subr.mxu0 0.0
        %276 = vmatpush2.msra.mxu0 0.0
        %277 = vmatprep.subr.mxu0 0.0
        %278 = vmatpush2.msra.mxu0 0.0
        %279 = vmatprep.subr.mxu0 0.0
        %280 = vmatpush2.msra.mxu0 0.0
        %281 = vmatprep.subr.mxu0 0.0
        %282 = vmatpush2.msra.mxu0 0.0
        %283 = vmatprep.subr.mxu0 0.0
        %284 = vmatpush2.msra.mxu0 0.0
        %285 = vmatprep.subr.mxu0 0.0
        %286 = vmatpush2.msra.mxu0 0.0
        %287 = vmatprep.subr.mxu0 0.0
        %288 = vmatpush2.msra.mxu0 0.0
        %289 = vmatprep.subr.mxu0 0.0
        %290 = vmatpush2.msra.mxu0 0.0
        %291 = vmatprep.subr.mxu0 0.0
        %292 = vmatpush2.msra.mxu0 0.0
        %293 = vmatprep.subr.mxu0 0.0
        %294 = vmatpush2.msra.mxu0 0.0
        %295 = vmatprep.subr.mxu0 0.0
        %296 = vmatpush2.msra.mxu0 0.0
        %297 = vmatprep.subr.mxu0 0.0
        %298 = vmatpush2.msra.mxu0 0.0
        %299 = vmatprep.subr.mxu0 0.0
        %300 = vmatpush2.msra.mxu0 0.0
        %301 = vmatprep.mubr.f32.mxu0 0.0
        %302 = vmatmul.mubr.f32.gmra.mxu0 %v231
        %v303 = vpop.f32.mrf.mxu0
        %v304 = vadd.f32 %v227, %v303
        %v305 = vpop.f32.mrf.mxu0
        %306 = vdwg.mxu0
        %v307 = vlaneseq
        %v308 = vand.u32 %v307, 127
        %vm309 = vcmp.lt.s32.totalorder %v308, 32
        %v310 = vsel %vm309, 1, 0
        %v311 = vcvt.s32.f32 %v310
        %v312 = vmul.f32 %v304, %v311
        %313 = vadd.xlane.f32.xlu0 %v312
        %v314 = vpop.xlane.xlu0 %313
        %v315 = vrcp.pop 32.0
        %v316 = vmul.f32 %v314, %v315
        %v317 = vsub.f32 %v304, %v316
        %v318 = vmul.f32 %v317, %v311
        %v319 = vmul.f32 %v318, %v318
        %320 = vadd.xlane.f32.xlu0 %v319
        %v321 = vpop.xlane.xlu0 %320
        %v322 = vmul.f32 %v321, %v315
        %v323 = vadd.f32 %v322, 1e-05
        %v324 = vrsqrt.pop %v323
        %v325 = vmul.f32 %v318, %v324
        %v326 = vld [vmem:[%s3] sm:$0x1]
        %v328 = vlaneseq
        %v329 = vshrl.u32 %v328, 7
        %v330 = vsub.s32 0, %v329
        %v331 = vrot.slane %v326, %v330
        %v333 = vmul.f32 %v325, %v331
        %v334 = vld [vmem:[%s4] sm:$0x1]
        %v336 = vlaneseq
        %v337 = vshrl.u32 %v336, 7
        %v338 = vsub.s32 0, %v337
        %v339 = vrot.slane %v334, %v338
        %v341 = vadd.f32 %v333, %v339
        %342 = vst [vmem:[%s215] sm:$0xff] %v341
        %s343 = sand.u32 %s137, 1
        %s344 = scalar_lea.sflag [#allocation3], %s343
        %s345 = sand.u32 %s137, 1
        %s346 = smul.addr %s345, 8
        %s347 = scalar_lea.vmem [#allocation2], %s346
        // Predicated region
        $region41: #{tpu_custom_call.1} parent=39 // pred_check
          %p348 = pneg %p147
        $region42: #{tpu_custom_call.1} parent=39 // pred_check_branch
          %350 = sbr.rel (%p348) target = $region44
        $region43: #{tpu_custom_call.1} parent=39 // pred_region
          %s352 = ssub.s32 128, 128
          %353 = vsyncadd %s344, %s352
          %s354 = smul.addr %s19, 128
          %s355 = scalar_lea.hbm %s5, %s354
          %s357 = sshll.u32 %s347, 4
          %s358 = int_to_ptr.vmem [resolvable:$true] %s357
          %360 = dma.vmem_to_hbm [thread:$0]  %s358, 128, %s355, %s344
        $region44: #{tpu_custom_call.1} parent=39 // pred_fallthru
          _
      $region40: #{tpu_custom_call.1} parent=5 // pred_fallthru
        _
      %p361 = scmp.le.s32.totalorder 2, %s14
      // Predicated region
      $region45: #{tpu_custom_call.1} parent=5 // pred_check
        %p362 = pneg %p361
      $region46: #{tpu_custom_call.1} parent=5 // pred_check_branch
        %364 = sbr.rel (%p362) target = $region48
      $region47: #{tpu_custom_call.1} parent=5 // pred_region
        %s365 = ssub.s32 %s14, 2
        // Predicated region
        $region49: #{tpu_custom_call.1} parent=47 // pred_check
          %p366 = pneg %p153
        $region50: #{tpu_custom_call.1} parent=47 // pred_check_branch
          %368 = sbr.rel (%p366) target = $region52
        $region51: #{tpu_custom_call.1} parent=47 // pred_region
          %s369 = sand.u32 %s138, 1
          %s370 = scalar_lea.sflag [#allocation3], %s369
          %s371 = sand.u32 %s138, 1
          %s372 = smul.addr %s371, 8
          %s373 = scalar_lea.vmem [#allocation2], %s372
          %374 = dma.done %s370, 128
        $region52: #{tpu_custom_call.1} parent=47 // pred_fallthru
          _
      $region48: #{tpu_custom_call.1} parent=5 // pred_fallthru
        _
    $region6: #{tpu_custom_call.1} parent=1 // loop_footer
      %s18 = sadd.s32 1, %s14
    $region7: #{tpu_custom_call.1} parent=1 // loop_footer_branch
      %13 = sbr.rel target = $region3
    $region8: #{tpu_custom_call.1} parent=1 // loop_exit
      _
    %375 = vsyncpa [#allocation3], 1
    %s376 = scalar_lea.sflag [#allocation3], 1
    %377 = vsyncpa %s376, 1

</llo_original>
